<compile_context>
chip_gen: v7x
topology: tpu7x:2x2x1
jax: 0.10.0
libtpu: 0.0.40
codegen_flags: <defaults>
</compile_context>

<pallas_src>
import functools

import jax
import jax.numpy as jnp
import numpy as np
from jax.experimental import pallas as pl
from jax.experimental.pallas import tpu as pltpu

LN_EPS = 1e-5


def _layernorm(v, g, b):
    mean = jnp.mean(v, axis=-1, keepdims=True)
    var = jnp.mean((v - mean) ** 2, axis=-1, keepdims=True)
    return (v - mean) * jax.lax.rsqrt(var + LN_EPS) * g + b


def _energy_kernel(use_target, gamma, max_energy, K, *refs):
    if use_target:
        (xp_ref, ext_ref, vp_ref, w1_ref, w2_ref, lin2_ref, emb_ref,
         emb_out_ref, pred_out_ref) = refs
    else:
        (xp_ref, vp_ref, w1_ref, w2_ref, lin2_ref, emb_ref,
         emb_out_ref, pred_out_ref) = refs
        ext_ref = None

    pad = (K - 1) // 2
    bblk, T, E = emb_out_ref.shape
    H = w1_ref.shape[2]
    M = bblk * T                       # folded row count per grid step
    f32 = jnp.float32
    bf16 = jnp.bfloat16

    # Packed per-channel params (one DMA): rows = b1,g1,be1,b2,g2,be2,wl,bl.
    b1, g1, be1 = vp_ref[0:1, :], vp_ref[1:2, :], vp_ref[2:3, :]
    b2, g2, be2 = vp_ref[3:4, :], vp_ref[4:5, :], vp_ref[5:6, :]
    wl = vp_ref[6:7, :]
    bl = vp_ref[7:8, 0:1]                                   # (1, 1)

    xv = xp_ref[...]                                        # (bblk, T+2pad, E) bf16

    # ---- conv1: K shifted windows, one 2-D MXU dot per tap, f32 accumulate.
    # (bblk*T, E) x (E, H); per-batch windows never bleed because the wrapper
    # zero-pads each batch before folding.
    h = jnp.dot(xv[:, 0:T, :].reshape(M, E), w1_ref[0],
                preferred_element_type=f32)
    for k in range(1, K):
        h = h + jnp.dot(xv[:, k:k + T, :].reshape(M, E), w1_ref[k],
                        preferred_element_type=f32)
    h = jnp.maximum(h + b1, 0.0)
    h = _layernorm(h, g1, be1)                              # (M, H) f32
    # dropout: identity (eval mode)

    # ---- conv2: per-batch zero pad in f32, cast each tap window to bf16
    # right before its dot (cheaper than slicing sublane-packed bf16 on v5e).
    if pad > 0:
        zrow = jnp.zeros((bblk, pad, H), f32)
        h_p = jnp.concatenate([zrow, h.reshape(bblk, T, H), zrow], axis=1)
    else:
        h_p = h.reshape(bblk, T, H)                         # (bblk, T+2pad, H)
    h2 = jnp.dot(h_p[:, 0:T, :].reshape(M, H).astype(bf16), w2_ref[0],
                 preferred_element_type=f32)
    for k in range(1, K):
        h2 = h2 + jnp.dot(h_p[:, k:k + T, :].reshape(M, H).astype(bf16),
                          w2_ref[k], preferred_element_type=f32)
    h2 = jnp.maximum(h2 + b2, 0.0)
    h2 = _layernorm(h2, g2, be2)                            # (M, H) f32

    # ---- final linear H -> 1, computed exactly once in f32; the same values
    # feed the pred output and the bucketize path (consistent near boundaries).
    pred = jnp.sum(h2 * wl, axis=-1, keepdims=True) + bl    # (M, 1) f32
    pred_out_ref[...] = pred.reshape(bblk, T, 1)

    # ---- energy -> clamp -> bucketize (one-hot via boundary-pair compares)
    # -> embedding lookup as a bf16 one-hot matmul.
    if use_target:
        energy = ext_ref[...].reshape(M, 1) * (1.0 / max_energy)
    else:
        energy = pred * gamma
    energy = jnp.clip(energy, 0.0, 1.0)                     # (M, 1)
    # torch.bucketize(e, lin, right=False): idx = #{i : lin[i] < e}.
    # one-hot[j] = 1  <=>  lin[j] >= e  AND  lin[j-1] < e   (lin[-1] := -FLT_MAX)
    hi = lin2_ref[0:1, :] >= energy                         # (M, V)
    lo = lin2_ref[1:2, :] < energy                          # (M, V)
    onehot = jnp.logical_and(hi, lo).astype(bf16)           # (M, V) bf16
    embeds = jnp.dot(onehot, emb_ref[...],
                     preferred_element_type=f32)            # (M, E) f32
    emb_out_ref[...] = embeds.reshape(bblk, T, E).astype(emb_out_ref.dtype)


def make_params(key, E, H, K, V):
    ks = jax.random.split(key, 4)
    p = {}
    p["w1"] = 0.1 * jax.random.normal(ks[0], (K, E, H), jnp.float32)
    p["b1"] = jnp.zeros((1, H), jnp.float32)
    p["g1"] = jnp.ones((1, H), jnp.float32)
    p["be1"] = jnp.zeros((1, H), jnp.float32)
    p["w2"] = 0.1 * jax.random.normal(ks[1], (K, H, H), jnp.float32)
    p["b2"] = jnp.zeros((1, H), jnp.float32)
    p["g2"] = jnp.ones((1, H), jnp.float32)
    p["be2"] = jnp.zeros((1, H), jnp.float32)
    p["wl"] = 0.1 * jax.random.normal(ks[2], (1, H), jnp.float32)
    p["bl"] = jnp.full((1, 1), 0.3, jnp.float32)
    p["emb"] = jax.random.normal(ks[3], (V, E), jnp.float32)  # nn.Embedding ~ N(0,1)
    p["lin"] = jnp.linspace(0.0, 1.0, V, dtype=jnp.float32).reshape(1, V)
    return p


def _pick_batch_block(B, T):
    """Batch-fold heuristic: ~>=128 MXU rows / step, but keep >=2 grid steps
    (v7x megacore) when B allows.  bblk>1 only when T%8==0 so the in-kernel
    leading-dim merges/splits are layout-free."""
    if T % 8 != 0:
        return 1
    target = max(1, -(-128 // max(T, 1)))
    divs = [d for d in range(1, B + 1) if B % d == 0]
    bblk = max([d for d in divs if d <= target] or [1])
    if B // bblk < 2:
        two = [d for d in divs if B // d >= 2]
        if two:
            bblk = max(two)
    return bblk


def energy_predictor_forward(x, params, target_energy=None, gamma=1.0,
                             max_energy=2.0, kernel_size=3, batch_block=None,
                             emb_out_dtype=jnp.float32):
    B, T, E = x.shape
    K = kernel_size
    pad = (K - 1) // 2
    P = T + 2 * pad
    H = params["w1"].shape[2]
    V = params["lin"].shape[1]
    use_target = target_energy is not None

    bblk = _pick_batch_block(B, T) if batch_block is None else int(batch_block)
    assert B % bblk == 0, "batch_block must divide the batch size"
    grid = (B // bblk,)

    # bf16 matmul operands (f32 accumulation happens in-kernel).
    xp = jnp.pad(x, ((0, 0), (pad, pad), (0, 0))).astype(jnp.bfloat16)  # (B,P,E)
    w1 = params["w1"].astype(jnp.bfloat16)                              # (K,E,H)
    w2 = params["w2"].astype(jnp.bfloat16)                              # (K,H,H)
    emb = params["emb"].astype(jnp.bfloat16)                            # (V,E)

    # 8 tiny per-channel vectors packed into one (8, H) f32 operand -> 1 DMA.
    vp = jnp.concatenate([
        params["b1"], params["g1"], params["be1"],
        params["b2"], params["g2"], params["be2"],
        params["wl"],
        jnp.broadcast_to(params["bl"], (1, H)),
    ], axis=0)

    # Bucketize boundaries + shifted boundaries (lin[-1] := -FLT_MAX) so the
    # in-kernel one-hot is just two compares and an AND (no iota / reduce).
    lin = params["lin"].astype(jnp.float32)
    lin_prev = jnp.concatenate(
        [jnp.full((1, 1), jnp.finfo(jnp.float32).min, jnp.float32),
         lin[:, :-1]], axis=1)
    lin2 = jnp.concatenate([lin, lin_prev], axis=0)                     # (2,V)

    kernel = functools.partial(_energy_kernel, use_target, float(gamma),
                               float(max_energy), K)

    in_specs = [pl.BlockSpec((bblk, P, E), lambda i: (i, 0, 0))]
    args = [xp]
    if use_target:
        ext = jnp.reshape(target_energy, (B, T, 1)).astype(jnp.float32)
        in_specs.append(pl.BlockSpec((bblk, T, 1), lambda i: (i, 0, 0)))
        args.append(ext)
    # Grid-invariant operands: constant block index -> staged once in VMEM.
    in_specs += [
        pl.BlockSpec((8, H), lambda i: (0, 0)),
        pl.BlockSpec((K, E, H), lambda i: (0, 0, 0)),
        pl.BlockSpec((K, H, H), lambda i: (0, 0, 0)),
        pl.BlockSpec((2, V), lambda i: (0, 0)),
        pl.BlockSpec((V, E), lambda i: (0, 0)),
    ]
    args += [vp, w1, w2, lin2, emb]

    out_specs = [
        pl.BlockSpec((bblk, T, E), lambda i: (i, 0, 0)),
        pl.BlockSpec((bblk, T, 1), lambda i: (i, 0, 0)),
    ]
    out_shape = [
        jax.ShapeDtypeStruct((B, T, E), emb_out_dtype),
        jax.ShapeDtypeStruct((B, T, 1), jnp.float32),
    ]

    # Explicit scoped-VMEM budget: raises v5e's 16 MiB default, stays within
    # v7x's 64 MiB physical VMEM.  (Tiny at demo shapes; matters once T grows.)
    block_bytes = (
        bblk * P * E * 2 + (bblk * T * 4 if use_target else 0)
        + 8 * H * 4 + K * E * H * 2 + K * H * H * 2 + 2 * V * 4 + V * E * 2
        + bblk * T * E * 4 + bblk * T * 4)
    vmem_limit = int(min(max(6 * block_bytes + (4 << 20), 32 << 20), 48 << 20))

    emb_out, pred = pl.pallas_call(
        kernel,
        grid=grid,
        in_specs=in_specs,
        out_specs=out_specs,
        out_shape=out_shape,
        compiler_params=pltpu.CompilerParams(
            dimension_semantics=("parallel",),      # batch axis -> megacore
            vmem_limit_bytes=vmem_limit),
    )(*args)

    return emb_out, pred.reshape(B, T)


def _ref_forward(x, p, gamma, max_energy, K, target_energy=None):
    """Pure-JAX reference (eval mode), mirroring the kernel's bf16 matmul inputs."""
    B, T, E = x.shape
    pad = (K - 1) // 2
    f32 = jnp.float32

    xp = jnp.pad(x, ((0, 0), (pad, pad), (0, 0))).astype(jnp.bfloat16)
    w1 = p["w1"].astype(jnp.bfloat16)
    w2 = p["w2"].astype(jnp.bfloat16)
    emb = p["emb"].astype(jnp.bfloat16)

    def ln(v, g, b):
        m = jnp.mean(v, -1, keepdims=True)
        s = jnp.mean((v - m) ** 2, -1, keepdims=True)
        return (v - m) * jax.lax.rsqrt(s + LN_EPS) * g + b

    h = sum(jnp.einsum("bte,eh->bth", xp[:, k:k + T], w1[k],
                       preferred_element_type=f32) for k in range(K)) + p["b1"]
    h = ln(jax.nn.relu(h), p["g1"], p["be1"])
    hp = jnp.pad(h, ((0, 0), (pad, pad), (0, 0)))              # f32 pad (as kernel)
    h2 = sum(jnp.einsum("bth,hc->btc", hp[:, k:k + T].astype(jnp.bfloat16), w2[k],
                        preferred_element_type=f32) for k in range(K)) + p["b2"]
    h2 = ln(jax.nn.relu(h2), p["g2"], p["be2"])
    pred = jnp.sum(h2 * p["wl"], axis=-1) + p["bl"][0, 0]      # (B, T) f32
    if target_energy is None:
        energy = pred * gamma
    else:
        energy = target_energy * (1.0 / max_energy)
    energy = jnp.clip(energy, 0.0, 1.0)
    idx = jnp.searchsorted(p["lin"][0], energy.reshape(-1),
                           side="left").reshape(B, T)
    return emb[idx].astype(f32), pred


if __name__ == "__main__":
    E, H, K, V = 32, 32, 3, 256
    max_energy, gamma = 2.0, 1.0

    key = jax.random.PRNGKey(0)
    kp, kx1, kx2, kt = jax.random.split(key, 4)
    params = make_params(kp, E, H, K, V)
    lin_np = np.asarray(params["lin"][0])

    def check(emb_out, pred, ref_emb, ref_pred, energy_for_mask):
        # Predicted energy (bf16 conv inputs -> loosened tolerance vs f32).
        np.testing.assert_allclose(np.asarray(pred), np.asarray(ref_pred),
                                   rtol=2e-2, atol=2e-2)
        # Embedding rows are exact bf16 table rows; only compare positions whose
        # energy is not within 1e-4 of a bucket boundary (accumulation-order
        # noise could legally flip the bucket there).
        dist = np.abs(np.asarray(energy_for_mask)[..., None]
                      - lin_np[None, None, :]).min(-1)
        stable = dist > 1e-4
        np.testing.assert_allclose(np.asarray(emb_out)[stable],
                                   np.asarray(ref_emb)[stable],
                                   rtol=1e-6, atol=1e-6)

    # 1) tiny shapes (B=2, T=16): bblk=1, grid=(2,), predicted-energy branch.
    x1 = jax.random.normal(kx1, (2, 16, E), jnp.float32)
    emb_o, pred = energy_predictor_forward(x1, params, gamma=gamma,
                                           max_energy=max_energy, kernel_size=K)
    jax.block_until_ready((emb_o, pred))
    ref_e, ref_p = _ref_forward(x1, params, gamma, max_energy, K)
    check(emb_o, pred, ref_e, ref_p, np.asarray(ref_p) * gamma)

    # 2) batch-folded path (B=4, T=24 -> bblk=2, grid=(2,)).
    x2 = jax.random.normal(kx2, (4, 24, E), jnp.float32)
    emb_o, pred = energy_predictor_forward(x2, params, gamma=gamma,
                                           max_energy=max_energy, kernel_size=K)
    jax.block_until_ready((emb_o, pred))
    ref_e, ref_p = _ref_forward(x2, params, gamma, max_energy, K)
    check(emb_o, pred, ref_e, ref_p, np.asarray(ref_p) * gamma)

    # 3) target-energy branch on the folded config.
    tgt = jax.random.uniform(kt, (4, 24), jnp.float32, minval=0.0,
                             maxval=max_energy)
    emb_o, pred = energy_predictor_forward(x2, params, target_energy=tgt,
                                           gamma=gamma, max_energy=max_energy,
                                           kernel_size=K)
    jax.block_until_ready((emb_o, pred))
    ref_e, ref_p = _ref_forward(x2, params, gamma, max_energy, K,
                                target_energy=tgt)
    check(emb_o, pred, ref_e, ref_p, np.asarray(tgt) * (1.0 / max_energy))

    print("KERNEL_OK")
</pallas_src>

<mosaic_0001>
module attributes {stable_mosaic.version = 11 : i64} {
  func.func @_energy_kernel(%arg0: i32, %arg1: memref<1x18x32xbf16, #tpu.memory_space<vmem>>, %arg2: memref<8x32xf32, #tpu.memory_space<vmem>>, %arg3: memref<3x32x32xbf16, #tpu.memory_space<vmem>>, %arg4: memref<3x32x32xbf16, #tpu.memory_space<vmem>>, %arg5: memref<2x256xf32, #tpu.memory_space<vmem>>, %arg6: memref<256x32xbf16, #tpu.memory_space<vmem>>, %arg7: memref<1x16x32xf32, #tpu.memory_space<vmem>>, %arg8: memref<1x16x1xf32, #tpu.memory_space<vmem>>) attributes {dimension_semantics = [#tpu.dimension_semantics<parallel>], iteration_bounds = array<i64: 2>, scalar_prefetch = 0 : i64, scratch_operands = 0 : i64, tpu.core_type = #tpu.core_type<tc>, window_params = [{transform_indices = @transform_0, window_bounds = array<i64: 1, 18, 32>}, {pipeline_mode = #tpu.pipeline_mode<synchronous>, transform_indices = @transform_1, window_bounds = array<i64: 8, 32>}, {pipeline_mode = #tpu.pipeline_mode<synchronous>, transform_indices = @transform_2, window_bounds = array<i64: 3, 32, 32>}, {pipeline_mode = #tpu.pipeline_mode<synchronous>, transform_indices = @transform_3, window_bounds = array<i64: 3, 32, 32>}, {pipeline_mode = #tpu.pipeline_mode<synchronous>, transform_indices = @transform_4, window_bounds = array<i64: 2, 256>}, {pipeline_mode = #tpu.pipeline_mode<synchronous>, transform_indices = @transform_5, window_bounds = array<i64: 256, 32>}, {transform_indices = @transform_6, window_bounds = array<i64: 1, 16, 32>}, {transform_indices = @transform_7, window_bounds = array<i64: 1, 16, 1>}]} {
    %c0 = arith.constant 0 : index
    %c0_0 = arith.constant 0 : index
    %0 = vector.load %arg2[%c0, %c0_0] : memref<8x32xf32, #tpu.memory_space<vmem>>, vector<1x32xf32>
    %c1 = arith.constant 1 : index
    %c0_1 = arith.constant 0 : index
    %1 = vector.load %arg2[%c1, %c0_1] : memref<8x32xf32, #tpu.memory_space<vmem>>, vector<1x32xf32>
    %c2 = arith.constant 2 : index
    %c0_2 = arith.constant 0 : index
    %2 = vector.load %arg2[%c2, %c0_2] : memref<8x32xf32, #tpu.memory_space<vmem>>, vector<1x32xf32>
    %c3 = arith.constant 3 : index
    %c0_3 = arith.constant 0 : index
    %3 = vector.load %arg2[%c3, %c0_3] : memref<8x32xf32, #tpu.memory_space<vmem>>, vector<1x32xf32>
    %c4 = arith.constant 4 : index
    %c0_4 = arith.constant 0 : index
    %4 = vector.load %arg2[%c4, %c0_4] : memref<8x32xf32, #tpu.memory_space<vmem>>, vector<1x32xf32>
    %c5 = arith.constant 5 : index
    %c0_5 = arith.constant 0 : index
    %5 = vector.load %arg2[%c5, %c0_5] : memref<8x32xf32, #tpu.memory_space<vmem>>, vector<1x32xf32>
    %c6 = arith.constant 6 : index
    %c0_6 = arith.constant 0 : index
    %6 = vector.load %arg2[%c6, %c0_6] : memref<8x32xf32, #tpu.memory_space<vmem>>, vector<1x32xf32>
    %c7 = arith.constant 7 : index
    %c0_7 = arith.constant 0 : index
    %7 = vector.load %arg2[%c7, %c0_7] : memref<8x32xf32, #tpu.memory_space<vmem>>, vector<1x1xf32>
    %c0_8 = arith.constant 0 : index
    %c0_9 = arith.constant 0 : index
    %c0_10 = arith.constant 0 : index
    %8 = vector.load %arg1[%c0_8, %c0_9, %c0_10] : memref<1x18x32xbf16, #tpu.memory_space<vmem>>, vector<1x18x32xbf16>
    %9 = vector.extract_strided_slice %8 {offsets = [0, 0, 0], sizes = [1, 16, 32], strides = [1, 1, 1]} : vector<1x18x32xbf16> to vector<1x16x32xbf16>
    %10 = vector.shape_cast %9 : vector<1x16x32xbf16> to vector<16x32xbf16>
    %c0_11 = arith.constant 0 : index
    %c0_12 = arith.constant 0 : index
    %c0_13 = arith.constant 0 : index
    %11 = vector.load %arg3[%c0_11, %c0_12, %c0_13] : memref<3x32x32xbf16, #tpu.memory_space<vmem>>, vector<1x32x32xbf16>
    %12 = vector.shape_cast %11 : vector<1x32x32xbf16> to vector<32x32xbf16>
    %cst = arith.constant dense<0.000000e+00> : vector<16x32xf32>
    %13 = tpu.matmul %10, %12, %cst {dimension_numbers = #tpu.dot_dimension_numbers<[1], [0], [0], [1], [0, 0, 1, 1], [], []>} : vector<16x32xbf16>, vector<32x32xbf16>, vector<16x32xf32> -> vector<16x32xf32>
    %14 = vector.extract_strided_slice %8 {offsets = [0, 1, 0], sizes = [1, 16, 32], strides = [1, 1, 1]} : vector<1x18x32xbf16> to vector<1x16x32xbf16>
    %15 = vector.shape_cast %14 : vector<1x16x32xbf16> to vector<16x32xbf16>
    %c1_14 = arith.constant 1 : index
    %c0_15 = arith.constant 0 : index
    %c0_16 = arith.constant 0 : index
    %16 = vector.load %arg3[%c1_14, %c0_15, %c0_16] : memref<3x32x32xbf16, #tpu.memory_space<vmem>>, vector<1x32x32xbf16>
    %17 = vector.shape_cast %16 : vector<1x32x32xbf16> to vector<32x32xbf16>
    %cst_17 = arith.constant dense<0.000000e+00> : vector<16x32xf32>
    %18 = tpu.matmul %15, %17, %cst_17 {dimension_numbers = #tpu.dot_dimension_numbers<[1], [0], [0], [1], [0, 0, 1, 1], [], []>} : vector<16x32xbf16>, vector<32x32xbf16>, vector<16x32xf32> -> vector<16x32xf32>
    %19 = arith.addf %13, %18 : vector<16x32xf32>
    %20 = vector.extract_strided_slice %8 {offsets = [0, 2, 0], sizes = [1, 16, 32], strides = [1, 1, 1]} : vector<1x18x32xbf16> to vector<1x16x32xbf16>
    %21 = vector.shape_cast %20 : vector<1x16x32xbf16> to vector<16x32xbf16>
    %c2_18 = arith.constant 2 : index
    %c0_19 = arith.constant 0 : index
    %c0_20 = arith.constant 0 : index
    %22 = vector.load %arg3[%c2_18, %c0_19, %c0_20] : memref<3x32x32xbf16, #tpu.memory_space<vmem>>, vector<1x32x32xbf16>
    %23 = vector.shape_cast %22 : vector<1x32x32xbf16> to vector<32x32xbf16>
    %cst_21 = arith.constant dense<0.000000e+00> : vector<16x32xf32>
    %24 = tpu.matmul %21, %23, %cst_21 {dimension_numbers = #tpu.dot_dimension_numbers<[1], [0], [0], [1], [0, 0, 1, 1], [], []>} : vector<16x32xbf16>, vector<32x32xbf16>, vector<16x32xf32> -> vector<16x32xf32>
    %25 = arith.addf %19, %24 : vector<16x32xf32>
    %26 = vector.broadcast %0 : vector<1x32xf32> to vector<16x32xf32>
    %27 = arith.addf %25, %26 : vector<16x32xf32>
    %cst_22 = arith.constant 0.000000e+00 : f32
    %28 = vector.broadcast %cst_22 : f32 to vector<16x32xf32>
    %29 = arith.maximumf %27, %28 : vector<16x32xf32>
    %cst_23 = arith.constant dense<0.000000e+00> : vector<16xf32>
    %30 = vector.multi_reduction <add>, %29, %cst_23 [1] : vector<16x32xf32> to vector<16xf32>
    %31 = vector.shape_cast %30 : vector<16xf32> to vector<16x1xf32>
    %cst_24 = arith.constant 3.200000e+01 : f32
    %32 = vector.broadcast %cst_24 : f32 to vector<16x1xf32>
    %33 = arith.divf %31, %32 : vector<16x1xf32>
    %34 = vector.broadcast %33 : vector<16x1xf32> to vector<16x32xf32>
    %35 = arith.subf %29, %34 : vector<16x32xf32>
    %36 = arith.mulf %35, %35 : vector<16x32xf32>
    %cst_25 = arith.constant dense<0.000000e+00> : vector<16xf32>
    %37 = vector.multi_reduction <add>, %36, %cst_25 [1] : vector<16x32xf32> to vector<16xf32>
    %38 = vector.shape_cast %37 : vector<16xf32> to vector<16x1xf32>
    %cst_26 = arith.constant 3.200000e+01 : f32
    %39 = vector.broadcast %cst_26 : f32 to vector<16x1xf32>
    %40 = arith.divf %38, %39 : vector<16x1xf32>
    %41 = vector.broadcast %33 : vector<16x1xf32> to vector<16x32xf32>
    %42 = arith.subf %29, %41 : vector<16x32xf32>
    %cst_27 = arith.constant 9.99999974E-6 : f32
    %43 = vector.broadcast %cst_27 : f32 to vector<16x1xf32>
    %44 = arith.addf %40, %43 : vector<16x1xf32>
    %45 = math.rsqrt %44 : vector<16x1xf32>
    %46 = vector.broadcast %45 : vector<16x1xf32> to vector<16x32xf32>
    %47 = arith.mulf %42, %46 : vector<16x32xf32>
    %48 = vector.broadcast %1 : vector<1x32xf32> to vector<16x32xf32>
    %49 = arith.mulf %47, %48 : vector<16x32xf32>
    %50 = vector.broadcast %2 : vector<1x32xf32> to vector<16x32xf32>
    %51 = arith.addf %49, %50 : vector<16x32xf32>
    %cst_28 = arith.constant 0.000000e+00 : f32
    %52 = vector.broadcast %cst_28 : f32 to vector<1x1x32xf32>
    %53 = vector.shape_cast %51 : vector<16x32xf32> to vector<1x16x32xf32>
    %54 = tpu.concatenate %52, %53, %52 in 1 : vector<1x1x32xf32>, vector<1x16x32xf32>, vector<1x1x32xf32> -> vector<1x18x32xf32>
    %55 = vector.extract_strided_slice %54 {offsets = [0, 0, 0], sizes = [1, 16, 32], strides = [1, 1, 1]} : vector<1x18x32xf32> to vector<1x16x32xf32>
    %56 = vector.shape_cast %55 : vector<1x16x32xf32> to vector<16x32xf32>
    %57 = arith.truncf %56 : vector<16x32xf32> to vector<16x32xbf16>
    %c0_29 = arith.constant 0 : index
    %c0_30 = arith.constant 0 : index
    %c0_31 = arith.constant 0 : index
    %58 = vector.load %arg4[%c0_29, %c0_30, %c0_31] : memref<3x32x32xbf16, #tpu.memory_space<vmem>>, vector<1x32x32xbf16>
    %59 = vector.shape_cast %58 : vector<1x32x32xbf16> to vector<32x32xbf16>
    %cst_32 = arith.constant dense<0.000000e+00> : vector<16x32xf32>
    %60 = tpu.matmul %57, %59, %cst_32 {dimension_numbers = #tpu.dot_dimension_numbers<[1], [0], [0], [1], [0, 0, 1, 1], [], []>} : vector<16x32xbf16>, vector<32x32xbf16>, vector<16x32xf32> -> vector<16x32xf32>
    %61 = vector.extract_strided_slice %54 {offsets = [0, 1, 0], sizes = [1, 16, 32], strides = [1, 1, 1]} : vector<1x18x32xf32> to vector<1x16x32xf32>
    %62 = vector.shape_cast %61 : vector<1x16x32xf32> to vector<16x32xf32>
    %63 = arith.truncf %62 : vector<16x32xf32> to vector<16x32xbf16>
    %c1_33 = arith.constant 1 : index
    %c0_34 = arith.constant 0 : index
    %c0_35 = arith.constant 0 : index
    %64 = vector.load %arg4[%c1_33, %c0_34, %c0_35] : memref<3x32x32xbf16, #tpu.memory_space<vmem>>, vector<1x32x32xbf16>
    %65 = vector.shape_cast %64 : vector<1x32x32xbf16> to vector<32x32xbf16>
    %cst_36 = arith.constant dense<0.000000e+00> : vector<16x32xf32>
    %66 = tpu.matmul %63, %65, %cst_36 {dimension_numbers = #tpu.dot_dimension_numbers<[1], [0], [0], [1], [0, 0, 1, 1], [], []>} : vector<16x32xbf16>, vector<32x32xbf16>, vector<16x32xf32> -> vector<16x32xf32>
    %67 = arith.addf %60, %66 : vector<16x32xf32>
    %68 = vector.extract_strided_slice %54 {offsets = [0, 2, 0], sizes = [1, 16, 32], strides = [1, 1, 1]} : vector<1x18x32xf32> to vector<1x16x32xf32>
    %69 = vector.shape_cast %68 : vector<1x16x32xf32> to vector<16x32xf32>
    %70 = arith.truncf %69 : vector<16x32xf32> to vector<16x32xbf16>
    %c2_37 = arith.constant 2 : index
    %c0_38 = arith.constant 0 : index
    %c0_39 = arith.constant 0 : index
    %71 = vector.load %arg4[%c2_37, %c0_38, %c0_39] : memref<3x32x32xbf16, #tpu.memory_space<vmem>>, vector<1x32x32xbf16>
    %72 = vector.shape_cast %71 : vector<1x32x32xbf16> to vector<32x32xbf16>
    %cst_40 = arith.constant dense<0.000000e+00> : vector<16x32xf32>
    %73 = tpu.matmul %70, %72, %cst_40 {dimension_numbers = #tpu.dot_dimension_numbers<[1], [0], [0], [1], [0, 0, 1, 1], [], []>} : vector<16x32xbf16>, vector<32x32xbf16>, vector<16x32xf32> -> vector<16x32xf32>
    %74 = arith.addf %67, %73 : vector<16x32xf32>
    %75 = vector.broadcast %3 : vector<1x32xf32> to vector<16x32xf32>
    %76 = arith.addf %74, %75 : vector<16x32xf32>
    %cst_41 = arith.constant 0.000000e+00 : f32
    %77 = vector.broadcast %cst_41 : f32 to vector<16x32xf32>
    %78 = arith.maximumf %76, %77 : vector<16x32xf32>
    %cst_42 = arith.constant dense<0.000000e+00> : vector<16xf32>
    %79 = vector.multi_reduction <add>, %78, %cst_42 [1] : vector<16x32xf32> to vector<16xf32>
    %80 = vector.shape_cast %79 : vector<16xf32> to vector<16x1xf32>
    %cst_43 = arith.constant 3.200000e+01 : f32
    %81 = vector.broadcast %cst_43 : f32 to vector<16x1xf32>
    %82 = arith.divf %80, %81 : vector<16x1xf32>
    %83 = vector.broadcast %82 : vector<16x1xf32> to vector<16x32xf32>
    %84 = arith.subf %78, %83 : vector<16x32xf32>
    %85 = arith.mulf %84, %84 : vector<16x32xf32>
    %cst_44 = arith.constant dense<0.000000e+00> : vector<16xf32>
    %86 = vector.multi_reduction <add>, %85, %cst_44 [1] : vector<16x32xf32> to vector<16xf32>
    %87 = vector.shape_cast %86 : vector<16xf32> to vector<16x1xf32>
    %cst_45 = arith.constant 3.200000e+01 : f32
    %88 = vector.broadcast %cst_45 : f32 to vector<16x1xf32>
    %89 = arith.divf %87, %88 : vector<16x1xf32>
    %90 = vector.broadcast %82 : vector<16x1xf32> to vector<16x32xf32>
    %91 = arith.subf %78, %90 : vector<16x32xf32>
    %cst_46 = arith.constant 9.99999974E-6 : f32
    %92 = vector.broadcast %cst_46 : f32 to vector<16x1xf32>
    %93 = arith.addf %89, %92 : vector<16x1xf32>
    %94 = math.rsqrt %93 : vector<16x1xf32>
    %95 = vector.broadcast %94 : vector<16x1xf32> to vector<16x32xf32>
    %96 = arith.mulf %91, %95 : vector<16x32xf32>
    %97 = vector.broadcast %4 : vector<1x32xf32> to vector<16x32xf32>
    %98 = arith.mulf %96, %97 : vector<16x32xf32>
    %99 = vector.broadcast %5 : vector<1x32xf32> to vector<16x32xf32>
    %100 = arith.addf %98, %99 : vector<16x32xf32>
    %101 = vector.broadcast %6 : vector<1x32xf32> to vector<16x32xf32>
    %102 = arith.mulf %100, %101 : vector<16x32xf32>
    %cst_47 = arith.constant dense<0.000000e+00> : vector<16xf32>
    %103 = vector.multi_reduction <add>, %102, %cst_47 [1] : vector<16x32xf32> to vector<16xf32>
    %104 = vector.shape_cast %103 : vector<16xf32> to vector<16x1xf32>
    %105 = vector.broadcast %7 : vector<1x1xf32> to vector<16x1xf32>
    %106 = arith.addf %104, %105 : vector<16x1xf32>
    %107 = vector.shape_cast %106 : vector<16x1xf32> to vector<1x16x1xf32>
    %c0_48 = arith.constant 0 : index
    %c0_49 = arith.constant 0 : index
    %c0_50 = arith.constant 0 : index
    %108 = vector.load %arg8[%c0_48, %c0_49, %c0_50] : memref<1x16x1xf32, #tpu.memory_space<vmem>>, vector<1x16x1xf32>
    tpu.vector_store %arg8[%c0_48, %c0_49, %c0_50], %107 {strides = array<i32>} : memref<1x16x1xf32, #tpu.memory_space<vmem>>, vector<1x16x1xf32>,
    %cst_51 = arith.constant 1.000000e+00 : f32
    %109 = vector.broadcast %cst_51 : f32 to vector<16x1xf32>
    %110 = arith.mulf %106, %109 : vector<16x1xf32>
    %cst_52 = arith.constant 0.000000e+00 : f32
    %cst_53 = arith.constant 1.000000e+00 : f32
    %111 = vector.broadcast %cst_52 : f32 to vector<16x1xf32>
    %112 = arith.maximumf %111, %110 : vector<16x1xf32>
    %113 = vector.broadcast %cst_53 : f32 to vector<16x1xf32>
    %114 = arith.minimumf %113, %112 : vector<16x1xf32>
    %c0_54 = arith.constant 0 : index
    %c0_55 = arith.constant 0 : index
    %115 = vector.load %arg5[%c0_54, %c0_55] : memref<2x256xf32, #tpu.memory_space<vmem>>, vector<1x256xf32>
    %116 = vector.broadcast %115 : vector<1x256xf32> to vector<16x256xf32>
    %117 = vector.broadcast %114 : vector<16x1xf32> to vector<16x256xf32>
    %118 = arith.cmpf oge, %116, %117 : vector<16x256xf32>
    %c1_56 = arith.constant 1 : index
    %c0_57 = arith.constant 0 : index
    %119 = vector.load %arg5[%c1_56, %c0_57] : memref<2x256xf32, #tpu.memory_space<vmem>>, vector<1x256xf32>
    %120 = vector.broadcast %119 : vector<1x256xf32> to vector<16x256xf32>
    %121 = vector.broadcast %114 : vector<16x1xf32> to vector<16x256xf32>
    %122 = arith.cmpf olt, %120, %121 : vector<16x256xf32>
    %123 = arith.andi %118, %122 : vector<16x256xi1>
    %124 = arith.extui %123 : vector<16x256xi1> to vector<16x256xi32>
    %125 = arith.sitofp %124 : vector<16x256xi32> to vector<16x256xf32>
    %126 = arith.truncf %125 : vector<16x256xf32> to vector<16x256xbf16>
    %c0_58 = arith.constant 0 : index
    %c0_59 = arith.constant 0 : index
    %127 = vector.load %arg6[%c0_58, %c0_59] : memref<256x32xbf16, #tpu.memory_space<vmem>>, vector<256x32xbf16>
    %cst_60 = arith.constant dense<0.000000e+00> : vector<16x32xf32>
    %128 = tpu.matmul %126, %127, %cst_60 {dimension_numbers = #tpu.dot_dimension_numbers<[1], [0], [0], [1], [0, 0, 1, 1], [], []>} : vector<16x256xbf16>, vector<256x32xbf16>, vector<16x32xf32> -> vector<16x32xf32>
    %129 = vector.shape_cast %128 : vector<16x32xf32> to vector<1x16x32xf32>
    %c0_61 = arith.constant 0 : index
    %c0_62 = arith.constant 0 : index
    %c0_63 = arith.constant 0 : index
    %130 = vector.load %arg7[%c0_61, %c0_62, %c0_63] : memref<1x16x32xf32, #tpu.memory_space<vmem>>, vector<1x16x32xf32>
    tpu.vector_store %arg7[%c0_61, %c0_62, %c0_63], %129 {strides = array<i32>} : memref<1x16x32xf32, #tpu.memory_space<vmem>>, vector<1x16x32xf32>,
    return
  }
  func.func @transform_0(%arg0: i32) -> (i32, i32, i32) {
    %c0_i32 = arith.constant 0 : i32
    %c0_i32_0 = arith.constant 0 : i32
    %c0_i32_1 = arith.constant 0 : i32
    return %arg0, %c0_i32, %c0_i32_0 : i32, i32, i32
  }
  func.func @transform_1(%arg0: i32) -> (i32, i32) {
    %c0_i32 = arith.constant 0 : i32
    %c0_i32_0 = arith.constant 0 : i32
    %c0_i32_1 = arith.constant 0 : i32
    return %c0_i32, %c0_i32_0 : i32, i32
  }
  func.func @transform_2(%arg0: i32) -> (i32, i32, i32) {
    %c0_i32 = arith.constant 0 : i32
    %c0_i32_0 = arith.constant 0 : i32
    %c0_i32_1 = arith.constant 0 : i32
    %c0_i32_2 = arith.constant 0 : i32
    return %c0_i32, %c0_i32_0, %c0_i32_1 : i32, i32, i32
  }
  func.func @transform_3(%arg0: i32) -> (i32, i32, i32) {
    %c0_i32 = arith.constant 0 : i32
    %c0_i32_0 = arith.constant 0 : i32
    %c0_i32_1 = arith.constant 0 : i32
    %c0_i32_2 = arith.constant 0 : i32
    return %c0_i32, %c0_i32_0, %c0_i32_1 : i32, i32, i32
  }
  func.func @transform_4(%arg0: i32) -> (i32, i32) {
    %c0_i32 = arith.constant 0 : i32
    %c0_i32_0 = arith.constant 0 : i32
    %c0_i32_1 = arith.constant 0 : i32
    return %c0_i32, %c0_i32_0 : i32, i32
  }
  func.func @transform_5(%arg0: i32) -> (i32, i32) {
    %c0_i32 = arith.constant 0 : i32
    %c0_i32_0 = arith.constant 0 : i32
    %c0_i32_1 = arith.constant 0 : i32
    return %c0_i32, %c0_i32_0 : i32, i32
  }
  func.func @transform_6(%arg0: i32) -> (i32, i32, i32) {
    %c0_i32 = arith.constant 0 : i32
    %c0_i32_0 = arith.constant 0 : i32
    %c0_i32_1 = arith.constant 0 : i32
    return %arg0, %c0_i32, %c0_i32_0 : i32, i32, i32
  }
  func.func @transform_7(%arg0: i32) -> (i32, i32, i32) {
    %c0_i32 = arith.constant 0 : i32
    %c0_i32_0 = arith.constant 0 : i32
    %c0_i32_1 = arith.constant 0 : i32
    return %arg0, %c0_i32, %c0_i32_0 : i32, i32, i32
  }
}

</mosaic_0001>

<llo_original>
// kernel: tpu_custom_call.1
$region0: #{tpu_custom_call.1}
  #allocation0 [shape = 'u32[]', space=smem, size = 0x4, offset = 0x4, fixed_abs, tag = 'smem constant byte address 0x4 - core index']
  #allocation1 [shape = 'u32[144,128]{1,0:T(1,128)}', space=vmem, size = 0x12000, scoped, tag = 'internal scratch']
  %s0 = inlined_call_operand.vmem [shape: bf16[2,18,32], index: 0, kind: input, shape index: {}]
  %s1 = inlined_call_operand.vmem [shape: f32[8,32], index: 1, kind: input, shape index: {}]
  %s2 = inlined_call_operand.vmem [shape: bf16[3,32,32], index: 2, kind: input, shape index: {}]
  %s3 = inlined_call_operand.vmem [shape: bf16[3,32,32], index: 3, kind: input, shape index: {}]
  %s4 = inlined_call_operand.vmem [shape: f32[2,256], index: 4, kind: input, shape index: {}]
  %s5 = inlined_call_operand.vmem [shape: bf16[256,32], index: 5, kind: input, shape index: {}]
  %s6 = inlined_call_operand.hbm [shape: f32[2,16,32], index: 6, kind: output, shape index: {0}]
  %s7 = inlined_call_operand.vmem [shape: f32[2,16,1], index: 7, kind: output, shape index: {1}]
  %8 = xla_tuple %s6, %s7
  %s9 = sld [smem:[#allocation0]]
  $region65: #{tpu_custom_call.1} parent=0
    _
  %s11 = ssub.s32 1, %s9
  %s12 = scalar_select 0, %s11, %s9
  $region1: #{tpu_custom_call.1} parent=0
    #allocation2 [shape = 'u8[16384]{0}', space=vmem, size = 0x4000, scoped, tag = 'output window, operand 0']
    #allocation3 [shape = 's32[2]{0}', space=sflag, size = 0x8, scoped, tag = 'scoped memory for tpu_custom_call.1']
    %13 = vsyncpa [#allocation3], 0
    %s14 = scalar_lea.sflag [#allocation3], 1
    %15 = vsyncpa %s14, 0
    loop: start=0, step=1, limit=4
    $region2: #{tpu_custom_call.1} parent=1 // loop_pre_header
      _
    $region3: #{tpu_custom_call.1} parent=1 // loop_header
      %s17 = sphi 0, %s21
      %p18 = scmp.ge.s32.totalorder %s17, 4
      %s27 = sphi 0, %s29
      %s30 = sphi 0, %s27
      %s31 = sphi 0, %s30
      %s47 = sphi 0, %s31
      %s51 = sphi 0, %s51
      %s53 = sphi 0, %s51
      %s54 = sphi 0, %s53
      %s68 = sphi 0, %s54
      %s72 = sphi 0, %s72
      %s74 = sphi 0, %s72
      %s75 = sphi 0, %s74
      %s89 = sphi 0, %s75
      %s93 = sphi 0, %s93
      %s95 = sphi 0, %s93
      %s96 = sphi 0, %s95
      %s110 = sphi 0, %s96
      %s114 = sphi 0, %s114
      %s116 = sphi 0, %s114
      %s117 = sphi 0, %s116
      %s131 = sphi 0, %s117
      %s135 = sphi 0, %s135
      %s137 = sphi 0, %s135
      %s138 = sphi 0, %s137
      %s152 = sphi 0, %s138
      %s158 = sphi 0, %s160
      %s161 = sphi 0, %s158
      %s162 = sphi 0, %s161
      %s178 = sphi 0, %s162
      %s184 = sphi 0, %s186
      %s187 = sphi 0, %s184
      %s188 = sphi 0, %s187
      %s204 = sphi 0, %s188
    $region4: #{tpu_custom_call.1} parent=1 // loop_header_branch
      %20 = sbr.rel (%p18) target = $region8
    $region5: #{tpu_custom_call.1} parent=1 // loop_body
      %s22 = ssub.s32 %s17, 1
      %s23 = ssub.s32 %s17, 2
      %s24 = sadd.s32 %s17, 1
      %s25 = ssub.s32 %s17, %s24
      %p26 = scmp.eq.s32.totalorder %s25, 0
      %s28 = sadd.s32 %s27, 1
      %s29 = scalar_select %p26, %s27, %s28
      %p32 = pneg %p26
      %p33 = scmp.eq.s32.totalorder %s17, 1
      %p34 = por %p32, %p33
      %p35 = scmp.ne.s32.totalorder %s27, %s30
      %p36 = scmp.eq.s32.totalorder %s17, 0
      %p37 = por %p35, %p36
      %p38 = scmp.ne.s32.totalorder %s27, %s30
      %p39 = scmp.eq.s32.totalorder %s22, 1
      %p40 = por %p38, %p39
      %p41 = scmp.ne.s32.totalorder %s30, %s31
      %p42 = scmp.eq.s32.totalorder %s22, 0
      %p43 = por %p41, %p42
      %p44 = scmp.ne.s32.totalorder %s30, %s31
      %p45 = scmp.eq.s32.totalorder %s23, 1
      %p46 = por %p44, %p45
      %p48 = scmp.ne.s32.totalorder %s31, %s47
      %p49 = scmp.eq.s32.totalorder %s23, 0
      %p50 = por %p48, %p49
      %s52 = sadd.s32 %s51, 1
      %p55 = scmp.eq.s32.totalorder %s17, 1
      %p56 = scmp.ne.s32.totalorder %s51, %s53
      %p57 = scmp.eq.s32.totalorder %s17, 0
      %p58 = por %p56, %p57
      %p59 = scmp.ne.s32.totalorder %s51, %s53
      %p60 = scmp.eq.s32.totalorder %s22, 1
      %p61 = por %p59, %p60
      %p62 = scmp.ne.s32.totalorder %s53, %s54
      %p63 = scmp.eq.s32.totalorder %s22, 0
      %p64 = por %p62, %p63
      %p65 = scmp.ne.s32.totalorder %s53, %s54
      %p66 = scmp.eq.s32.totalorder %s23, 1
      %p67 = por %p65, %p66
      %p69 = scmp.ne.s32.totalorder %s54, %s68
      %p70 = scmp.eq.s32.totalorder %s23, 0
      %p71 = por %p69, %p70
      %s73 = sadd.s32 %s72, 1
      %p76 = scmp.eq.s32.totalorder %s17, 1
      %p77 = scmp.ne.s32.totalorder %s72, %s74
      %p78 = scmp.eq.s32.totalorder %s17, 0
      %p79 = por %p77, %p78
      %p80 = scmp.ne.s32.totalorder %s72, %s74
      %p81 = scmp.eq.s32.totalorder %s22, 1
      %p82 = por %p80, %p81
      %p83 = scmp.ne.s32.totalorder %s74, %s75
      %p84 = scmp.eq.s32.totalorder %s22, 0
      %p85 = por %p83, %p84
      %p86 = scmp.ne.s32.totalorder %s74, %s75
      %p87 = scmp.eq.s32.totalorder %s23, 1
      %p88 = por %p86, %p87
      %p90 = scmp.ne.s32.totalorder %s75, %s89
      %p91 = scmp.eq.s32.totalorder %s23, 0
      %p92 = por %p90, %p91
      %s94 = sadd.s32 %s93, 1
      %p97 = scmp.eq.s32.totalorder %s17, 1
      %p98 = scmp.ne.s32.totalorder %s93, %s95
      %p99 = scmp.eq.s32.totalorder %s17, 0
      %p100 = por %p98, %p99
      %p101 = scmp.ne.s32.totalorder %s93, %s95
      %p102 = scmp.eq.s32.totalorder %s22, 1
      %p103 = por %p101, %p102
      %p104 = scmp.ne.s32.totalorder %s95, %s96
      %p105 = scmp.eq.s32.totalorder %s22, 0
      %p106 = por %p104, %p105
      %p107 = scmp.ne.s32.totalorder %s95, %s96
      %p108 = scmp.eq.s32.totalorder %s23, 1
      %p109 = por %p107, %p108
      %p111 = scmp.ne.s32.totalorder %s96, %s110
      %p112 = scmp.eq.s32.totalorder %s23, 0
      %p113 = por %p111, %p112
      %s115 = sadd.s32 %s114, 1
      %p118 = scmp.eq.s32.totalorder %s17, 1
      %p119 = scmp.ne.s32.totalorder %s114, %s116
      %p120 = scmp.eq.s32.totalorder %s17, 0
      %p121 = por %p119, %p120
      %p122 = scmp.ne.s32.totalorder %s114, %s116
      %p123 = scmp.eq.s32.totalorder %s22, 1
      %p124 = por %p122, %p123
      %p125 = scmp.ne.s32.totalorder %s116, %s117
      %p126 = scmp.eq.s32.totalorder %s22, 0
      %p127 = por %p125, %p126
      %p128 = scmp.ne.s32.totalorder %s116, %s117
      %p129 = scmp.eq.s32.totalorder %s23, 1
      %p130 = por %p128, %p129
      %p132 = scmp.ne.s32.totalorder %s117, %s131
      %p133 = scmp.eq.s32.totalorder %s23, 0
      %p134 = por %p132, %p133
      %s136 = sadd.s32 %s135, 1
      %p139 = scmp.eq.s32.totalorder %s17, 1
      %p140 = scmp.ne.s32.totalorder %s135, %s137
      %p141 = scmp.eq.s32.totalorder %s17, 0
      %p142 = por %p140, %p141
      %p143 = scmp.ne.s32.totalorder %s135, %s137
      %p144 = scmp.eq.s32.totalorder %s22, 1
      %p145 = por %p143, %p144
      %p146 = scmp.ne.s32.totalorder %s137, %s138
      %p147 = scmp.eq.s32.totalorder %s22, 0
      %p148 = por %p146, %p147
      %p149 = scmp.ne.s32.totalorder %s137, %s138
      %p150 = scmp.eq.s32.totalorder %s23, 1
      %p151 = por %p149, %p150
      %p153 = scmp.ne.s32.totalorder %s138, %s152
      %p154 = scmp.eq.s32.totalorder %s23, 0
      %p155 = por %p153, %p154
      %s156 = ssub.s32 %s17, %s24
      %p157 = scmp.eq.s32.totalorder %s156, 0
      %s159 = sadd.s32 %s158, 1
      %s160 = scalar_select %p157, %s158, %s159
      %p163 = pneg %p157
      %p164 = scmp.eq.s32.totalorder %s17, 1
      %p165 = por %p163, %p164
      %p166 = scmp.ne.s32.totalorder %s158, %s161
      %p167 = scmp.eq.s32.totalorder %s17, 0
      %p168 = por %p166, %p167
      %p169 = scmp.ne.s32.totalorder %s158, %s161
      %p170 = scmp.eq.s32.totalorder %s22, 1
      %p171 = por %p169, %p170
      %p172 = scmp.ne.s32.totalorder %s161, %s162
      %p173 = scmp.eq.s32.totalorder %s22, 0
      %p174 = por %p172, %p173
      %p175 = scmp.ne.s32.totalorder %s161, %s162
      %p176 = scmp.eq.s32.totalorder %s23, 1
      %p177 = por %p175, %p176
      %p179 = scmp.ne.s32.totalorder %s162, %s178
      %p180 = scmp.eq.s32.totalorder %s23, 0
      %p181 = por %p179, %p180
      %s182 = ssub.s32 %s17, %s24
      %p183 = scmp.eq.s32.totalorder %s182, 0
      %s185 = sadd.s32 %s184, 1
      %s186 = scalar_select %p183, %s184, %s185
      %p189 = pneg %p183
      %p190 = scmp.eq.s32.totalorder %s17, 1
      %p191 = por %p189, %p190
      %p192 = scmp.ne.s32.totalorder %s184, %s187
      %p193 = scmp.eq.s32.totalorder %s17, 0
      %p194 = por %p192, %p193
      %p195 = scmp.ne.s32.totalorder %s184, %s187
      %p196 = scmp.eq.s32.totalorder %s22, 1
      %p197 = por %p195, %p196
      %p198 = scmp.ne.s32.totalorder %s187, %s188
      %p199 = scmp.eq.s32.totalorder %s22, 0
      %p200 = por %p198, %p199
      %p201 = scmp.ne.s32.totalorder %s187, %s188
      %p202 = scmp.eq.s32.totalorder %s23, 1
      %p203 = por %p201, %p202
      %p205 = scmp.ne.s32.totalorder %s188, %s204
      %p206 = scmp.eq.s32.totalorder %s23, 0
      %p207 = por %p205, %p206
      %p208 = scmp.le.s32.totalorder 1, %s17
      %p209 = scmp.lt.s32.totalorder %s17, 3
      %p210 = pnand %p208, %p209
      %p211 = pneg %p210
      // Predicated region
      $region9: #{tpu_custom_call.1} parent=5 // pred_check
        _
      $region10: #{tpu_custom_call.1} parent=5 // pred_check_branch
        %213 = sbr.rel (%p210) target = $region12
      $region11: #{tpu_custom_call.1} parent=5 // pred_region
        %s214 = ssub.s32 %s17, 1
        // Predicated region
        $region13: #{tpu_custom_call.1} parent=11 // pred_check
          %p215 = pneg %p64
        $region14: #{tpu_custom_call.1} parent=11 // pred_check_branch
          %217 = sbr.rel (%p215) target = $region16
        $region15: #{tpu_custom_call.1} parent=11 // pred_region
          _
        $region16: #{tpu_custom_call.1} parent=11 // pred_fallthru
          _
        // Predicated region
        $region17: #{tpu_custom_call.1} parent=11 // pred_check
          %p218 = pneg %p85
        $region18: #{tpu_custom_call.1} parent=11 // pred_check_branch
          %220 = sbr.rel (%p218) target = $region20
        $region19: #{tpu_custom_call.1} parent=11 // pred_region
          _
        $region20: #{tpu_custom_call.1} parent=11 // pred_fallthru
          _
        // Predicated region
        $region21: #{tpu_custom_call.1} parent=11 // pred_check
          %p221 = pneg %p106
        $region22: #{tpu_custom_call.1} parent=11 // pred_check_branch
          %223 = sbr.rel (%p221) target = $region24
        $region23: #{tpu_custom_call.1} parent=11 // pred_region
          _
        $region24: #{tpu_custom_call.1} parent=11 // pred_fallthru
          _
        // Predicated region
        $region25: #{tpu_custom_call.1} parent=11 // pred_check
          %p224 = pneg %p127
        $region26: #{tpu_custom_call.1} parent=11 // pred_check_branch
          %226 = sbr.rel (%p224) target = $region28
        $region27: #{tpu_custom_call.1} parent=11 // pred_region
          _
        $region28: #{tpu_custom_call.1} parent=11 // pred_fallthru
          _
        // Predicated region
        $region29: #{tpu_custom_call.1} parent=11 // pred_check
          %p227 = pneg %p148
        $region30: #{tpu_custom_call.1} parent=11 // pred_check_branch
          %229 = sbr.rel (%p227) target = $region32
        $region31: #{tpu_custom_call.1} parent=11 // pred_region
          _
        $region32: #{tpu_custom_call.1} parent=11 // pred_fallthru
          _
      $region12: #{tpu_custom_call.1} parent=5 // pred_fallthru
        _
      %p230 = scmp.lt.s32.totalorder %s17, 2
      // Predicated region
      $region33: #{tpu_custom_call.1} parent=5 // pred_check
        %p231 = pneg %p230
      $region34: #{tpu_custom_call.1} parent=5 // pred_check_branch
        %233 = sbr.rel (%p231) target = $region36
      $region35: #{tpu_custom_call.1} parent=5 // pred_region
        // Predicated region
        $region37: #{tpu_custom_call.1} parent=35 // pred_check
          %p234 = pneg %p37
        $region38: #{tpu_custom_call.1} parent=35 // pred_check_branch
          %236 = sbr.rel (%p234) target = $region40
        $region39: #{tpu_custom_call.1} parent=35 // pred_region
          %p237 = scmp.lt.s32.totalorder %s17, 1
          %s238 = scalar_select %p237, %s17, 1
          %s239 = smul.addr %s238, 3
          %s240 = smul.addr %s239, 4
          %s241 = scalar_lea.vmem %s0, %s240
        $region40: #{tpu_custom_call.1} parent=35 // pred_fallthru
          _
      $region36: #{tpu_custom_call.1} parent=5 // pred_fallthru
        _
      %p242 = scmp.le.s32.totalorder 1, %s17
      %p243 = scmp.lt.s32.totalorder %s17, 3
      %p244 = pnand %p242, %p243
      %p245 = pneg %p244
      // Predicated region
      $region41: #{tpu_custom_call.1} parent=5 // pred_check
        _
      $region42: #{tpu_custom_call.1} parent=5 // pred_check_branch
        %247 = sbr.rel (%p244) target = $region44
      $region43: #{tpu_custom_call.1} parent=5 // pred_region
        %s248 = ssub.s32 %s17, 1
        %p249 = scmp.lt.s32.totalorder %s22, 1
        %s250 = scalar_select %p249, %s22, 1
        %s251 = smul.addr %s250, 3
        %s252 = smul.addr %s251, 4
        %s253 = scalar_lea.vmem %s0, %s252
        %p254 = pneg %p43
        %p255 = pneg %p40
        %p256 = pneg %p64
        %p257 = pneg %p61
        %p258 = pneg %p85
        %p259 = pneg %p82
        %p260 = pneg %p106
        %p261 = pneg %p103
        %p262 = pneg %p127
        %p263 = pneg %p124
        %p264 = pneg %p148
        %p265 = pneg %p145
        %p266 = pneg %p174
        %p267 = pneg %p171
        %s268 = sand.u32 %s161, 1
        %s269 = scalar_lea.sflag [#allocation3], %s268
        %s270 = sand.u32 %s161, 1
        %s271 = smul.addr %s270, 16
        %s272 = scalar_lea.vmem [#allocation2], %s271
        %p273 = pneg %p200
        %p274 = pneg %p197
        %p275 = scmp.lt.s32.totalorder %s22, 1
        %s276 = scalar_select %p275, %s22, 1
        %s277 = smul.addr %s276, 2
        %s278 = smul.addr %s277, 8
        %s279 = scalar_lea.vmem %s7, %s278
        %p280 = scmp.lt.s32.totalorder %s22, 1
        %s281 = scalar_select %p280, %s22, 1
        %s282 = smul.addr %s281, 3
        %s283 = smul.addr %s282, 4
        %s284 = scalar_lea.vmem %s0, %s283
        %p285 = scmp.lt.s32.totalorder %s22, 1
        %s286 = scalar_select %p285, %s22, 1
        %s287 = smul.addr %s286, 2
        %s288 = smul.addr %s287, 8
        %s289 = scalar_lea.vmem %s7, %s288
        %v291 = vld [vmem:[%s1] sm:$0x1]
        %v292 = vld [vmem:[%s1 + $0x1] sm:$0x1]
        %v293 = vld [vmem:[%s1 + $0x2] sm:$0x1]
        %v294 = vld [vmem:[%s1 + $0x3] sm:$0x1]
        %v295 = vld [vmem:[%s1 + $0x4] sm:$0x1]
        %v296 = vld [vmem:[%s1 + $0x5] sm:$0x1]
        %v297 = vld [vmem:[%s1 + $0x6] sm:$0x1]
        %v298 = vld [vmem:[%s1 + $0x7] sm:$0x1]
        %v299 = vld [vmem:[%s284] sm:$0xf]
        %v300 = vld [vmem:[%s284 + $0x4] sm:$0xf]
        %v301 = vld [vmem:[%s284 + $0x8] sm:$0x1]
        %v302 = vld [vmem:[%s2] sm:$0xf]
        %v303 = vld [vmem:[%s2 + $0x4] sm:$0xf]
        %v304 = vld [vmem:[%s2 + $0x8] sm:$0xf]
        %v305 = vld [vmem:[%s2 + $0xc] sm:$0xf]
        %s306 = scalar_lea.vmem %s2, 16
        %v307 = vld [vmem:[%s306] sm:$0xf]
        %v308 = vld [vmem:[%s306 + $0x4] sm:$0xf]
        %v309 = vld [vmem:[%s306 + $0x8] sm:$0xf]
        %v310 = vld [vmem:[%s306 + $0xc] sm:$0xf]
        %v314 = vunpack.c.l.b16 %v299
        %v315 = vunpack.c.l.b16 %v300
        %v316 = vunpack.c.l.b16 %v301
        %v317 = vpack.c.b16 %v315, %v314
        %v318 = vpack.c.b16 %v316, %v316
        %vm319 = vsmask.f32 7424
        %v321 = vshrl.u32 %v317, 16
        %v323 = vshll.u32 %v317, 16
        %v325 = vrot.slane %v323, 1
        %v326 = vor.u32 %v321, %v325
        %v328 = vshll.u32 %v318, 16
        %v330 = vrot.slane %v328, 1
        %v331 = vsel %vm319, %v326, %v330
        %v336 = vunpack.c.l.b16 %v307
        %v337 = vunpack.c.l.b16 %v308
        %v338 = vunpack.c.l.b16 %v309
        %v339 = vunpack.c.l.b16 %v310
        %v340 = vpack.c.b16 %v337, %v336
        %v341 = vpack.c.b16 %v339, %v338
        %vm344 = vcmask 261120
        %v346 = vsel %vm344, %v331, 0
        %348 = vmatprep.subr.bf16.mxu0 0
        %349 = vmatpush1.bf16.msra.mxu0 %v340
        %350 = vmatprep.subr.bf16.mxu0 0
        %351 = vmatpush1.bf16.msra.mxu0 %v341
        %352 = vmatprep.subr.bf16.mxu0 0
        %353 = vmatpush1.bf16.msra.mxu0 0
        %354 = vmatprep.subr.bf16.mxu0 0
        %355 = vmatpush1.bf16.msra.mxu0 0
        %356 = vmatprep.subr.bf16.mxu0 0
        %357 = vmatpush1.bf16.msra.mxu0 0
        %358 = vmatprep.subr.bf16.mxu0 0
        %359 = vmatpush1.bf16.msra.mxu0 0
        %360 = vmatprep.subr.bf16.mxu0 0
        %361 = vmatpush1.bf16.msra.mxu0 0
        %362 = vmatprep.subr.bf16.mxu0 0
        %363 = vmatpush1.bf16.msra.mxu0 0
        %364 = vmatprep.subr.bf16.mxu0 0
        %365 = vmatpush1.bf16.msra.mxu0 0
        %366 = vmatprep.subr.bf16.mxu0 0
        %367 = vmatpush1.bf16.msra.mxu0 0
        %368 = vmatprep.subr.bf16.mxu0 0
        %369 = vmatpush1.bf16.msra.mxu0 0
        %370 = vmatprep.subr.bf16.mxu0 0
        %371 = vmatpush1.bf16.msra.mxu0 0
        %372 = vmatprep.subr.bf16.mxu0 0
        %373 = vmatpush1.bf16.msra.mxu0 0
        %374 = vmatprep.subr.bf16.mxu0 0
        %375 = vmatpush1.bf16.msra.mxu0 0
        %376 = vmatprep.subr.bf16.mxu0 0
        %377 = vmatpush1.bf16.msra.mxu0 0
        %378 = vmatprep.subr.bf16.mxu0 0
        %379 = vmatpush1.bf16.msra.mxu0 0
        %380 = vmatprep.mubr.bf16.mxu0 0
        %381 = vmatmul.mubr.bf16.gmra.mrb[0].mxu0 %v346
        %v382 = vpop.f32.mrb[0].mxu0
        %v383 = vadd.f32 0.0, %v382
        %v384 = vpop.f32.mrb[0].mxu0
        %v385 = vpop.f32.mrb[0].mxu0
        %v386 = vadd.f32 0.0, %v385
        %v387 = vpop.f32.mrb[0].mxu0
        %388 = vdwg.mxu0
        %v393 = vunpack.c.l.b16 %v302
        %v394 = vunpack.c.l.b16 %v303
        %v395 = vunpack.c.l.b16 %v304
        %v396 = vunpack.c.l.b16 %v305
        %v397 = vpack.c.b16 %v394, %v393
        %v398 = vpack.c.b16 %v396, %v395
        %v401 = vsel %vm344, %v317, 0
        %403 = vmatprep.subr.bf16.mxu0 0
        %404 = vmatpush1.bf16.msra.mxu0 %v397
        %405 = vmatprep.subr.bf16.mxu0 0
        %406 = vmatpush1.bf16.msra.mxu0 %v398
        %407 = vmatprep.subr.bf16.mxu0 0
        %408 = vmatpush1.bf16.msra.mxu0 0
        %409 = vmatprep.subr.bf16.mxu0 0
        %410 = vmatpush1.bf16.msra.mxu0 0
        %411 = vmatprep.subr.bf16.mxu0 0
        %412 = vmatpush1.bf16.msra.mxu0 0
        %413 = vmatprep.subr.bf16.mxu0 0
        %414 = vmatpush1.bf16.msra.mxu0 0
        %415 = vmatprep.subr.bf16.mxu0 0
        %416 = vmatpush1.bf16.msra.mxu0 0
        %417 = vmatprep.subr.bf16.mxu0 0
        %418 = vmatpush1.bf16.msra.mxu0 0
        %419 = vmatprep.subr.bf16.mxu0 0
        %420 = vmatpush1.bf16.msra.mxu0 0
        %421 = vmatprep.subr.bf16.mxu0 0
        %422 = vmatpush1.bf16.msra.mxu0 0
        %423 = vmatprep.subr.bf16.mxu0 0
        %424 = vmatpush1.bf16.msra.mxu0 0
        %425 = vmatprep.subr.bf16.mxu0 0
        %426 = vmatpush1.bf16.msra.mxu0 0
        %427 = vmatprep.subr.bf16.mxu0 0
        %428 = vmatpush1.bf16.msra.mxu0 0
        %429 = vmatprep.subr.bf16.mxu0 0
        %430 = vmatpush1.bf16.msra.mxu0 0
        %431 = vmatprep.subr.bf16.mxu0 0
        %432 = vmatpush1.bf16.msra.mxu0 0
        %433 = vmatprep.subr.bf16.mxu0 0
        %434 = vmatpush1.bf16.msra.mxu0 0
        %435 = vmatprep.mubr.bf16.mxu0 0
        %436 = vmatmul.mubr.bf16.gmra.mrb[0].mxu0 %v401
        %v437 = vpop.f32.mrb[0].mxu0
        %v438 = vadd.f32 %v383, %v437
        %v439 = vpop.f32.mrb[0].mxu0
        %v440 = vpop.f32.mrb[0].mxu0
        %v441 = vadd.f32 %v386, %v440
        %v442 = vpop.f32.mrb[0].mxu0
        %443 = vdwg.mxu0
        %s444 = scalar_lea.vmem %s2, 32
        %v445 = vld [vmem:[%s444] sm:$0xf]
        %v446 = vld [vmem:[%s444 + $0x4] sm:$0xf]
        %v447 = vld [vmem:[%s444 + $0x8] sm:$0xf]
        %v448 = vld [vmem:[%s444 + $0xc] sm:$0xf]
        %vm449 = vcmask 1046528
        %v450 = vrot.slane %v317, 1
        %v451 = vrot.slane %v318, 1
        %v452 = vsel %vm449, %v450, %v451
        %v457 = vunpack.c.l.b16 %v445
        %v458 = vunpack.c.l.b16 %v446
        %v459 = vunpack.c.l.b16 %v447
        %v460 = vunpack.c.l.b16 %v448
        %v461 = vpack.c.b16 %v458, %v457
        %v462 = vpack.c.b16 %v460, %v459
        %v466 = vsel %vm344, %v452, 0
        %468 = vmatprep.subr.bf16.mxu0 0
        %469 = vmatpush1.bf16.msra.mxu0 %v461
        %470 = vmatprep.subr.bf16.mxu0 0
        %471 = vmatpush1.bf16.msra.mxu0 %v462
        %472 = vmatprep.subr.bf16.mxu0 0
        %473 = vmatpush1.bf16.msra.mxu0 0
        %474 = vmatprep.subr.bf16.mxu0 0
        %475 = vmatpush1.bf16.msra.mxu0 0
        %476 = vmatprep.subr.bf16.mxu0 0
        %477 = vmatpush1.bf16.msra.mxu0 0
        %478 = vmatprep.subr.bf16.mxu0 0
        %479 = vmatpush1.bf16.msra.mxu0 0
        %480 = vmatprep.subr.bf16.mxu0 0
        %481 = vmatpush1.bf16.msra.mxu0 0
        %482 = vmatprep.subr.bf16.mxu0 0
        %483 = vmatpush1.bf16.msra.mxu0 0
        %484 = vmatprep.subr.bf16.mxu0 0
        %485 = vmatpush1.bf16.msra.mxu0 0
        %486 = vmatprep.subr.bf16.mxu0 0
        %487 = vmatpush1.bf16.msra.mxu0 0
        %488 = vmatprep.subr.bf16.mxu0 0
        %489 = vmatpush1.bf16.msra.mxu0 0
        %490 = vmatprep.subr.bf16.mxu0 0
        %491 = vmatpush1.bf16.msra.mxu0 0
        %492 = vmatprep.subr.bf16.mxu0 0
        %493 = vmatpush1.bf16.msra.mxu0 0
        %494 = vmatprep.subr.bf16.mxu0 0
        %495 = vmatpush1.bf16.msra.mxu0 0
        %496 = vmatprep.subr.bf16.mxu0 0
        %497 = vmatpush1.bf16.msra.mxu0 0
        %498 = vmatprep.subr.bf16.mxu0 0
        %499 = vmatpush1.bf16.msra.mxu0 0
        %500 = vmatprep.mubr.bf16.mxu0 0
        %501 = vmatmul.mubr.bf16.gmra.mrb[0].mxu0 %v466
        %v502 = vpop.f32.mrb[0].mxu0
        %v503 = vadd.f32 0.0, %v502
        %v504 = vpop.f32.mrb[0].mxu0
        %v505 = vpop.f32.mrb[0].mxu0
        %v506 = vadd.f32 0.0, %v505
        %v507 = vpop.f32.mrb[0].mxu0
        %508 = vdwg.mxu0
        %v509 = vadd.f32 %v438, %v503
        %v510 = vadd.f32 %v441, %v506
        %v511 = vlaneseq
        %v512 = vshrl.u32 %v511, 7
        %v513 = vsub.s32 0, %v512
        %v514 = vrot.slane %v291, %v513
        %v515 = vadd.f32 %v509, %v514
        %v516 = vadd.f32 %v510, %v514
        %v517 = vmax.f32 %v515, 0.0
        %v518 = vmax.f32 %v516, 0.0
        %v519 = vsel %vm344, %v517, 0.0
        %520 = vadd.xlane.f32.xlu0 %v519
        %v521 = vpop.xlane.xlu0 %520
        %v522 = vsel %vm344, %v518, 0.0
        %523 = vadd.xlane.f32.xlu0 %v522
        %v524 = vpop.xlane.xlu0 %523
        %v525 = vrcp.pop 32.0
        %v526 = vmul.f32 %v521, %v525
        %v527 = vmul.f32 %v524, %v525
        %v528 = vsub.f32 %v517, %v526
        %v529 = vsub.f32 %v518, %v527
        %v530 = vmul.f32 %v528, %v528
        %v531 = vmul.f32 %v529, %v529
        %v532 = vsel %vm344, %v530, 0.0
        %533 = vadd.xlane.f32.xlu0 %v532
        %v534 = vpop.xlane.xlu0 %533
        %v535 = vsel %vm344, %v531, 0.0
        %536 = vadd.xlane.f32.xlu0 %v535
        %v537 = vpop.xlane.xlu0 %536
        %v538 = vmul.f32 %v534, %v525
        %v539 = vmul.f32 %v537, %v525
        %v540 = vadd.f32 %v538, 1e-05
        %v541 = vadd.f32 %v539, 1e-05
        %v542 = vrsqrt.pop %v540
        %v543 = vrsqrt.pop %v541
        %v544 = vmul.f32 %v528, %v542
        %v545 = vmul.f32 %v529, %v543
        %v546 = vlaneseq
        %v547 = vshrl.u32 %v546, 7
        %v548 = vsub.s32 0, %v547
        %v549 = vrot.slane %v292, %v548
        %v550 = vmul.f32 %v544, %v549
        %v551 = vmul.f32 %v545, %v549
        %v552 = vlaneseq
        %v553 = vshrl.u32 %v552, 7
        %v554 = vsub.s32 0, %v553
        %v555 = vrot.slane %v293, %v554
        %v556 = vadd.f32 %v550, %v555
        %v557 = vadd.f32 %v551, %v555
        %vm560 = vcmask 1040384
        %v561 = vrot.slane %v556, 7
        %v562 = vrot.slane %v557, 7
        %v563 = vsel %vm560, %v561, %v562
        %v567 = vsel %vm560, 0.0, %v561
        %v568 = vsel %vm560, %v562, 0.0
        %v569 = vpack.c.bf16 %v563, %v567
        %v570 = vld [vmem:[%s3] sm:$0xf]
        %v571 = vld [vmem:[%s3 + $0x4] sm:$0xf]
        %v572 = vld [vmem:[%s3 + $0x8] sm:$0xf]
        %v573 = vld [vmem:[%s3 + $0xc] sm:$0xf]
        %v574 = vpack.c.bf16 %v568, %v568
        %s575 = scalar_lea.vmem %s3, 16
        %v576 = vld [vmem:[%s575] sm:$0xf]
        %v577 = vld [vmem:[%s575 + $0x4] sm:$0xf]
        %v578 = vld [vmem:[%s575 + $0x8] sm:$0xf]
        %v579 = vld [vmem:[%s575 + $0xc] sm:$0xf]
        %v581 = vshrl.u32 %v569, 16
        %v583 = vshll.u32 %v569, 16
        %v585 = vrot.slane %v583, 1
        %v586 = vor.u32 %v581, %v585
        %v588 = vshll.u32 %v574, 16
        %v590 = vrot.slane %v588, 1
        %v591 = vsel %vm319, %v586, %v590
        %v596 = vunpack.c.l.b16 %v576
        %v597 = vunpack.c.l.b16 %v577
        %v598 = vunpack.c.l.b16 %v578
        %v599 = vunpack.c.l.b16 %v579
        %v600 = vpack.c.b16 %v597, %v596
        %v601 = vpack.c.b16 %v599, %v598
        %v605 = vsel %vm344, %v591, 0
        %607 = vmatprep.subr.bf16.mxu0 0
        %608 = vmatpush1.bf16.msra.mxu0 %v600
        %609 = vmatprep.subr.bf16.mxu0 0
        %610 = vmatpush1.bf16.msra.mxu0 %v601
        %611 = vmatprep.subr.bf16.mxu0 0
        %612 = vmatpush1.bf16.msra.mxu0 0
        %613 = vmatprep.subr.bf16.mxu0 0
        %614 = vmatpush1.bf16.msra.mxu0 0
        %615 = vmatprep.subr.bf16.mxu0 0
        %616 = vmatpush1.bf16.msra.mxu0 0
        %617 = vmatprep.subr.bf16.mxu0 0
        %618 = vmatpush1.bf16.msra.mxu0 0
        %619 = vmatprep.subr.bf16.mxu0 0
        %620 = vmatpush1.bf16.msra.mxu0 0
        %621 = vmatprep.subr.bf16.mxu0 0
        %622 = vmatpush1.bf16.msra.mxu0 0
        %623 = vmatprep.subr.bf16.mxu0 0
        %624 = vmatpush1.bf16.msra.mxu0 0
        %625 = vmatprep.subr.bf16.mxu0 0
        %626 = vmatpush1.bf16.msra.mxu0 0
        %627 = vmatprep.subr.bf16.mxu0 0
        %628 = vmatpush1.bf16.msra.mxu0 0
        %629 = vmatprep.subr.bf16.mxu0 0
        %630 = vmatpush1.bf16.msra.mxu0 0
        %631 = vmatprep.subr.bf16.mxu0 0
        %632 = vmatpush1.bf16.msra.mxu0 0
        %633 = vmatprep.subr.bf16.mxu0 0
        %634 = vmatpush1.bf16.msra.mxu0 0
        %635 = vmatprep.subr.bf16.mxu0 0
        %636 = vmatpush1.bf16.msra.mxu0 0
        %637 = vmatprep.subr.bf16.mxu0 0
        %638 = vmatpush1.bf16.msra.mxu0 0
        %639 = vmatprep.mubr.bf16.mxu0 0
        %640 = vmatmul.mubr.bf16.gmra.mrb[0].mxu0 %v605
        %v641 = vpop.f32.mrb[0].mxu0
        %v642 = vadd.f32 0.0, %v641
        %v643 = vpop.f32.mrb[0].mxu0
        %v644 = vpop.f32.mrb[0].mxu0
        %v645 = vadd.f32 0.0, %v644
        %v646 = vpop.f32.mrb[0].mxu0
        %647 = vdwg.mxu0
        %v652 = vunpack.c.l.b16 %v570
        %v653 = vunpack.c.l.b16 %v571
        %v654 = vunpack.c.l.b16 %v572
        %v655 = vunpack.c.l.b16 %v573
        %v656 = vpack.c.b16 %v653, %v652
        %v657 = vpack.c.b16 %v655, %v654
        %v660 = vsel %vm344, %v569, 0
        %662 = vmatprep.subr.bf16.mxu0 0
        %663 = vmatpush1.bf16.msra.mxu0 %v656
        %664 = vmatprep.subr.bf16.mxu0 0
        %665 = vmatpush1.bf16.msra.mxu0 %v657
        %666 = vmatprep.subr.bf16.mxu0 0
        %667 = vmatpush1.bf16.msra.mxu0 0
        %668 = vmatprep.subr.bf16.mxu0 0
        %669 = vmatpush1.bf16.msra.mxu0 0
        %670 = vmatprep.subr.bf16.mxu0 0
        %671 = vmatpush1.bf16.msra.mxu0 0
        %672 = vmatprep.subr.bf16.mxu0 0
        %673 = vmatpush1.bf16.msra.mxu0 0
        %674 = vmatprep.subr.bf16.mxu0 0
        %675 = vmatpush1.bf16.msra.mxu0 0
        %676 = vmatprep.subr.bf16.mxu0 0
        %677 = vmatpush1.bf16.msra.mxu0 0
        %678 = vmatprep.subr.bf16.mxu0 0
        %679 = vmatpush1.bf16.msra.mxu0 0
        %680 = vmatprep.subr.bf16.mxu0 0
        %681 = vmatpush1.bf16.msra.mxu0 0
        %682 = vmatprep.subr.bf16.mxu0 0
        %683 = vmatpush1.bf16.msra.mxu0 0
        %684 = vmatprep.subr.bf16.mxu0 0
        %685 = vmatpush1.bf16.msra.mxu0 0
        %686 = vmatprep.subr.bf16.mxu0 0
        %687 = vmatpush1.bf16.msra.mxu0 0
        %688 = vmatprep.subr.bf16.mxu0 0
        %689 = vmatpush1.bf16.msra.mxu0 0
        %690 = vmatprep.subr.bf16.mxu0 0
        %691 = vmatpush1.bf16.msra.mxu0 0
        %692 = vmatprep.subr.bf16.mxu0 0
        %693 = vmatpush1.bf16.msra.mxu0 0
        %694 = vmatprep.mubr.bf16.mxu0 0
        %695 = vmatmul.mubr.bf16.gmra.mrb[0].mxu0 %v660
        %v696 = vpop.f32.mrb[0].mxu0
        %v697 = vadd.f32 %v642, %v696
        %v698 = vpop.f32.mrb[0].mxu0
        %v699 = vpop.f32.mrb[0].mxu0
        %v700 = vadd.f32 %v645, %v699
        %v701 = vpop.f32.mrb[0].mxu0
        %702 = vdwg.mxu0
        %s703 = scalar_lea.vmem %s3, 32
        %v704 = vld [vmem:[%s703] sm:$0xf]
        %v705 = vld [vmem:[%s703 + $0x4] sm:$0xf]
        %v706 = vld [vmem:[%s703 + $0x8] sm:$0xf]
        %v707 = vld [vmem:[%s703 + $0xc] sm:$0xf]
        %v710 = vrot.slane %v569, 1
        %v711 = vrot.slane %v574, 1
        %v712 = vsel %vm449, %v710, %v711
        %v717 = vunpack.c.l.b16 %v704
        %v718 = vunpack.c.l.b16 %v705
        %v719 = vunpack.c.l.b16 %v706
        %v720 = vunpack.c.l.b16 %v707
        %v721 = vpack.c.b16 %v718, %v717
        %v722 = vpack.c.b16 %v720, %v719
        %v726 = vsel %vm344, %v712, 0
        %728 = vmatprep.subr.bf16.mxu0 0
        %729 = vmatpush1.bf16.msra.mxu0 %v721
        %730 = vmatprep.subr.bf16.mxu0 0
        %731 = vmatpush1.bf16.msra.mxu0 %v722
        %732 = vmatprep.subr.bf16.mxu0 0
        %733 = vmatpush1.bf16.msra.mxu0 0
        %734 = vmatprep.subr.bf16.mxu0 0
        %735 = vmatpush1.bf16.msra.mxu0 0
        %736 = vmatprep.subr.bf16.mxu0 0
        %737 = vmatpush1.bf16.msra.mxu0 0
        %738 = vmatprep.subr.bf16.mxu0 0
        %739 = vmatpush1.bf16.msra.mxu0 0
        %740 = vmatprep.subr.bf16.mxu0 0
        %741 = vmatpush1.bf16.msra.mxu0 0
        %742 = vmatprep.subr.bf16.mxu0 0
        %743 = vmatpush1.bf16.msra.mxu0 0
        %744 = vmatprep.subr.bf16.mxu0 0
        %745 = vmatpush1.bf16.msra.mxu0 0
        %746 = vmatprep.subr.bf16.mxu0 0
        %747 = vmatpush1.bf16.msra.mxu0 0
        %748 = vmatprep.subr.bf16.mxu0 0
        %749 = vmatpush1.bf16.msra.mxu0 0
        %750 = vmatprep.subr.bf16.mxu0 0
        %751 = vmatpush1.bf16.msra.mxu0 0
        %752 = vmatprep.subr.bf16.mxu0 0
        %753 = vmatpush1.bf16.msra.mxu0 0
        %754 = vmatprep.subr.bf16.mxu0 0
        %755 = vmatpush1.bf16.msra.mxu0 0
        %756 = vmatprep.subr.bf16.mxu0 0
        %757 = vmatpush1.bf16.msra.mxu0 0
        %758 = vmatprep.subr.bf16.mxu0 0
        %759 = vmatpush1.bf16.msra.mxu0 0
        %760 = vmatprep.mubr.bf16.mxu0 0
        %761 = vmatmul.mubr.bf16.gmra.mrb[0].mxu0 %v726
        %v762 = vpop.f32.mrb[0].mxu0
        %v763 = vadd.f32 0.0, %v762
        %v764 = vpop.f32.mrb[0].mxu0
        %v765 = vpop.f32.mrb[0].mxu0
        %v766 = vadd.f32 0.0, %v765
        %v767 = vpop.f32.mrb[0].mxu0
        %768 = vdwg.mxu0
        %v769 = vadd.f32 %v697, %v763
        %v770 = vadd.f32 %v700, %v766
        %v771 = vlaneseq
        %v772 = vshrl.u32 %v771, 7
        %v773 = vsub.s32 0, %v772
        %v774 = vrot.slane %v294, %v773
        %v775 = vadd.f32 %v769, %v774
        %v776 = vadd.f32 %v770, %v774
        %v777 = vmax.f32 %v775, 0.0
        %v778 = vmax.f32 %v776, 0.0
        %v779 = vsel %vm344, %v777, 0.0
        %780 = vadd.xlane.f32.xlu0 %v779
        %v781 = vpop.xlane.xlu0 %780
        %v782 = vsel %vm344, %v778, 0.0
        %783 = vadd.xlane.f32.xlu0 %v782
        %v784 = vpop.xlane.xlu0 %783
        %v785 = vmul.f32 %v781, %v525
        %v786 = vmul.f32 %v784, %v525
        %v787 = vsub.f32 %v777, %v785
        %v788 = vsub.f32 %v778, %v786
        %v789 = vmul.f32 %v787, %v787
        %v790 = vmul.f32 %v788, %v788
        %v791 = vsel %vm344, %v789, 0.0
        %792 = vadd.xlane.f32.xlu0 %v791
        %v793 = vpop.xlane.xlu0 %792
        %v794 = vsel %vm344, %v790, 0.0
        %795 = vadd.xlane.f32.xlu0 %v794
        %v796 = vpop.xlane.xlu0 %795
        %v797 = vmul.f32 %v793, %v525
        %v798 = vmul.f32 %v796, %v525
        %v799 = vadd.f32 %v797, 1e-05
        %v800 = vadd.f32 %v798, 1e-05
        %v801 = vrsqrt.pop %v799
        %v802 = vrsqrt.pop %v800
        %v803 = vmul.f32 %v787, %v801
        %v804 = vmul.f32 %v788, %v802
        %v805 = vlaneseq
        %v806 = vshrl.u32 %v805, 7
        %v807 = vsub.s32 0, %v806
        %v808 = vrot.slane %v295, %v807
        %v809 = vmul.f32 %v803, %v808
        %v810 = vmul.f32 %v804, %v808
        %v811 = vlaneseq
        %v812 = vshrl.u32 %v811, 7
        %v813 = vsub.s32 0, %v812
        %v814 = vrot.slane %v296, %v813
        %v815 = vadd.f32 %v809, %v814
        %v816 = vadd.f32 %v810, %v814
        %v817 = vlaneseq
        %v818 = vshrl.u32 %v817, 7
        %v819 = vsub.s32 0, %v818
        %v820 = vrot.slane %v297, %v819
        %v821 = vmul.f32 %v815, %v820
        %v822 = vmul.f32 %v816, %v820
        %v823 = vsel %vm344, %v821, 0.0
        %824 = vadd.xlane.f32.xlu0 %v823
        %v825 = vpop.xlane.xlu0 %824
        %v826 = vsel %vm344, %v822, 0.0
        %827 = vadd.xlane.f32.xlu0 %v826
        %v828 = vpop.xlane.xlu0 %827
        %v829 = vlaneseq
        %v830 = vshrl.u32 %v829, 7
        %v831 = vsub.s32 0, %v830
        %v832 = vrot.slane %v298, %v831
        %v833 = vadd.f32 %v825, %v832
        %v834 = vadd.f32 %v828, %v832
        %vm835 = vcmask 7168
        %836 = vst.msk [vmem:[%s289] sm:$0xff] %vm835, %v833
        %837 = vst.msk [vmem:[%s289 + $0x8] sm:$0xff] %vm835, %v834
        %v838 = vmax.f32 %v833, 0.0
        %v839 = vmax.f32 %v834, 0.0
        %v840 = vmin.f32 %v838, 1.0
        %v841 = vmin.f32 %v839, 1.0
        %v842 = vld [vmem:[%s4] ss:$2 sm:$0x3]
        %v844 = vlaneseq
        %v845 = vshrl.u32 %v844, 7
        %v846 = vsub.s32 0, %v845
        %v847 = vrot.slane %v842, %v846
        %v848 = vlaneseq
        %v849 = vshrl.u32 %v848, 7
        %v850 = vsub.s32 1, %v849
        %v851 = vrot.slane %v842, %v850
        %855 = vset.pattern.permute.xlu0 0
        %856 = vperm.xlu0 %855, %v840
        %v857 = vpop.permute.xlu0 %856
        %860 = vset.pattern.permute.xlu0 0
        %861 = vperm.xlu0 %860, %v841
        %v862 = vpop.permute.xlu0 %861
        %vm864 = vcmp.ge.f32.partialorder %v847, %v857
        %vm865 = vcmp.ge.f32.partialorder %v851, %v857
        %vm866 = vcmp.ge.f32.partialorder %v847, %v862
        %vm867 = vcmp.ge.f32.partialorder %v851, %v862
        %s868 = scalar_lea.vmem %s4, 1
        %v869 = vld [vmem:[%s868] ss:$2 sm:$0x3]
        %v871 = vlaneseq
        %v872 = vshrl.u32 %v871, 7
        %v873 = vsub.s32 0, %v872
        %v874 = vrot.slane %v869, %v873
        %v875 = vlaneseq
        %v876 = vshrl.u32 %v875, 7
        %v877 = vsub.s32 1, %v876
        %v878 = vrot.slane %v869, %v877
        %vm881 = vcmp.lt.f32.partialorder %v874, %v857
        %vm882 = vcmp.lt.f32.partialorder %v878, %v857
        %vm883 = vcmp.lt.f32.partialorder %v874, %v862
        %vm884 = vcmp.lt.f32.partialorder %v878, %v862
        %vm885 = vmand %vm864, %vm881
        %vm886 = vmand %vm865, %vm882
        %vm887 = vmand %vm866, %vm883
        %vm888 = vmand %vm867, %vm884
        %v889 = vsel %vm885, 1, 0
        %v890 = vsel %vm886, 1, 0
        %v891 = vsel %vm887, 1, 0
        %v892 = vsel %vm888, 1, 0
        %v893 = vcvt.s32.f32 %v889
        %v894 = vcvt.s32.f32 %v890
        %v895 = vcvt.s32.f32 %v891
        %v896 = vcvt.s32.f32 %v892
        %v897 = vpack.c.bf16 %v895, %v893
        %v898 = vpack.c.bf16 %v896, %v894
        %v899 = vld [vmem:[%s5] sm:$0xf]
        %v900 = vld [vmem:[%s5 + $0x4] sm:$0xf]
        %v901 = vld [vmem:[%s5 + $0x8] sm:$0xf]
        %v902 = vld [vmem:[%s5 + $0xc] sm:$0xf]
        %v903 = vld [vmem:[%s5 + $0x10] sm:$0xf]
        %v904 = vld [vmem:[%s5 + $0x14] sm:$0xf]
        %v905 = vld [vmem:[%s5 + $0x18] sm:$0xf]
        %v906 = vld [vmem:[%s5 + $0x1c] sm:$0xf]
        %v907 = vld [vmem:[%s5 + $0x20] sm:$0xf]
        %v908 = vld [vmem:[%s5 + $0x24] sm:$0xf]
        %v909 = vld [vmem:[%s5 + $0x28] sm:$0xf]
        %v910 = vld [vmem:[%s5 + $0x2c] sm:$0xf]
        %v911 = vld [vmem:[%s5 + $0x30] sm:$0xf]
        %v912 = vld [vmem:[%s5 + $0x34] sm:$0xf]
        %v913 = vld [vmem:[%s5 + $0x38] sm:$0xf]
        %v914 = vld [vmem:[%s5 + $0x3c] sm:$0xf]
        %v915 = vld [vmem:[%s5 + $0x40] sm:$0xf]
        %v916 = vld [vmem:[%s5 + $0x44] sm:$0xf]
        %v917 = vld [vmem:[%s5 + $0x48] sm:$0xf]
        %v918 = vld [vmem:[%s5 + $0x4c] sm:$0xf]
        %v919 = vld [vmem:[%s5 + $0x50] sm:$0xf]
        %v920 = vld [vmem:[%s5 + $0x54] sm:$0xf]
        %v921 = vld [vmem:[%s5 + $0x58] sm:$0xf]
        %v922 = vld [vmem:[%s5 + $0x5c] sm:$0xf]
        %v923 = vld [vmem:[%s5 + $0x60] sm:$0xf]
        %v924 = vld [vmem:[%s5 + $0x64] sm:$0xf]
        %v925 = vld [vmem:[%s5 + $0x68] sm:$0xf]
        %v926 = vld [vmem:[%s5 + $0x6c] sm:$0xf]
        %v927 = vld [vmem:[%s5 + $0x70] sm:$0xf]
        %v928 = vld [vmem:[%s5 + $0x74] sm:$0xf]
        %v929 = vld [vmem:[%s5 + $0x78] sm:$0xf]
        %v930 = vld [vmem:[%s5 + $0x7c] sm:$0xf]
        %v963 = vunpack.c.l.b16 %v899
        %v964 = vunpack.c.l.b16 %v900
        %v965 = vunpack.c.l.b16 %v901
        %v966 = vunpack.c.l.b16 %v902
        %v967 = vunpack.c.l.b16 %v903
        %v968 = vunpack.c.l.b16 %v904
        %v969 = vunpack.c.l.b16 %v905
        %v970 = vunpack.c.l.b16 %v906
        %v971 = vunpack.c.l.b16 %v907
        %v972 = vunpack.c.l.b16 %v908
        %v973 = vunpack.c.l.b16 %v909
        %v974 = vunpack.c.l.b16 %v910
        %v975 = vunpack.c.l.b16 %v911
        %v976 = vunpack.c.l.b16 %v912
        %v977 = vunpack.c.l.b16 %v913
        %v978 = vunpack.c.l.b16 %v914
        %v979 = vunpack.c.l.b16 %v915
        %v980 = vunpack.c.l.b16 %v916
        %v981 = vunpack.c.l.b16 %v917
        %v982 = vunpack.c.l.b16 %v918
        %v983 = vunpack.c.l.b16 %v919
        %v984 = vunpack.c.l.b16 %v920
        %v985 = vunpack.c.l.b16 %v921
        %v986 = vunpack.c.l.b16 %v922
        %v987 = vunpack.c.l.b16 %v923
        %v988 = vunpack.c.l.b16 %v924
        %v989 = vunpack.c.l.b16 %v925
        %v990 = vunpack.c.l.b16 %v926
        %v991 = vunpack.c.l.b16 %v927
        %v992 = vunpack.c.l.b16 %v928
        %v993 = vunpack.c.l.b16 %v929
        %v994 = vunpack.c.l.b16 %v930
        %v995 = vpack.c.b16 %v964, %v963
        %v996 = vpack.c.b16 %v966, %v965
        %v997 = vpack.c.b16 %v968, %v967
        %v998 = vpack.c.b16 %v970, %v969
        %v999 = vpack.c.b16 %v972, %v971
        %v1000 = vpack.c.b16 %v974, %v973
        %v1001 = vpack.c.b16 %v976, %v975
        %v1002 = vpack.c.b16 %v978, %v977
        %v1003 = vpack.c.b16 %v980, %v979
        %v1004 = vpack.c.b16 %v982, %v981
        %v1005 = vpack.c.b16 %v984, %v983
        %v1006 = vpack.c.b16 %v986, %v985
        %v1007 = vpack.c.b16 %v988, %v987
        %v1008 = vpack.c.b16 %v990, %v989
        %v1009 = vpack.c.b16 %v992, %v991
        %v1010 = vpack.c.b16 %v994, %v993
        %1027 = vmatprep.subr.bf16.mxu0 0
        %1028 = vmatpush1.bf16.msra.mxu0 %v995
        %1029 = vmatprep.subr.bf16.mxu0 0
        %1030 = vmatpush1.bf16.msra.mxu0 %v996
        %1031 = vmatprep.subr.bf16.mxu0 0
        %1032 = vmatpush1.bf16.msra.mxu0 %v997
        %1033 = vmatprep.subr.bf16.mxu0 0
        %1034 = vmatpush1.bf16.msra.mxu0 %v998
        %1035 = vmatprep.subr.bf16.mxu0 0
        %1036 = vmatpush1.bf16.msra.mxu0 %v999
        %1037 = vmatprep.subr.bf16.mxu0 0
        %1038 = vmatpush1.bf16.msra.mxu0 %v1000
        %1039 = vmatprep.subr.bf16.mxu0 0
        %1040 = vmatpush1.bf16.msra.mxu0 %v1001
        %1041 = vmatprep.subr.bf16.mxu0 0
        %1042 = vmatpush1.bf16.msra.mxu0 %v1002
        %1043 = vmatprep.subr.bf16.mxu0 0
        %1044 = vmatpush1.bf16.msra.mxu0 %v1003
        %1045 = vmatprep.subr.bf16.mxu0 0
        %1046 = vmatpush1.bf16.msra.mxu0 %v1004
        %1047 = vmatprep.subr.bf16.mxu0 0
        %1048 = vmatpush1.bf16.msra.mxu0 %v1005
        %1049 = vmatprep.subr.bf16.mxu0 0
        %1050 = vmatpush1.bf16.msra.mxu0 %v1006
        %1051 = vmatprep.subr.bf16.mxu0 0
        %1052 = vmatpush1.bf16.msra.mxu0 %v1007
        %1053 = vmatprep.subr.bf16.mxu0 0
        %1054 = vmatpush1.bf16.msra.mxu0 %v1008
        %1055 = vmatprep.subr.bf16.mxu0 0
        %1056 = vmatpush1.bf16.msra.mxu0 %v1009
        %1057 = vmatprep.subr.bf16.mxu0 0
        %1058 = vmatpush1.bf16.msra.mxu0 %v1010
        %1059 = vmatprep.mubr.bf16.mxu0 %v898
        %1060 = vmatmul.mubr.bf16.gmra.mrb[0].mxu0 %v897
        %v1061 = vpop.f32.mrb[0].mxu0
        %v1062 = vadd.f32 0.0, %v1061
        %v1063 = vpop.f32.mrb[0].mxu0
        %v1064 = vpop.f32.mrb[0].mxu0
        %v1065 = vadd.f32 0.0, %v1064
        %v1066 = vpop.f32.mrb[0].mxu0
        %1067 = vdwg.mxu0
        %1068 = vst.msk [vmem:[%s272] sm:$0xff] %vm344, %v1062
        %1069 = vst.msk [vmem:[%s272 + $0x8] sm:$0xff] %vm344, %v1065
        %s1070 = sand.u32 %s161, 1
        %s1071 = scalar_lea.sflag [#allocation3], %s1070
        %s1072 = sand.u32 %s161, 1
        %s1073 = smul.addr %s1072, 16
        %s1074 = scalar_lea.vmem [#allocation2], %s1073
        %p1075 = scmp.lt.s32.totalorder %s22, 1
        %s1076 = scalar_select %p1075, %s22, 1
        %s1077 = smul.addr %s1076, 2
        %s1078 = smul.addr %s1077, 8
        %s1079 = scalar_lea.vmem %s7, %s1078
        // Predicated region
        $region45: #{tpu_custom_call.1} parent=43 // pred_check
          %p1080 = pneg %p171
        $region46: #{tpu_custom_call.1} parent=43 // pred_check_branch
          %1082 = sbr.rel (%p1080) target = $region48
        $region47: #{tpu_custom_call.1} parent=43 // pred_region
          %s1084 = ssub.s32 256, 256
          %1085 = vsyncadd %s1071, %s1084
          %s1086 = smul.addr %s22, 2
          %s1087 = smul.addr %s1086, 128
          %s1088 = scalar_lea.hbm %s6, %s1087
          %s1089 = sshll.u32 %s1074, 4
          %s1090 = int_to_ptr.vmem [resolvable:$true] %s1089
          %1095 = dma.vmem_to_hbm [thread:$0]  %s1090, 256, %s1088, %s1071, 128, 128, 8
        $region48: #{tpu_custom_call.1} parent=43 // pred_fallthru
          _
        // Predicated region
        $region49: #{tpu_custom_call.1} parent=43 // pred_check
          %p1096 = pneg %p197
        $region50: #{tpu_custom_call.1} parent=43 // pred_check_branch
          %1098 = sbr.rel (%p1096) target = $region52
        $region51: #{tpu_custom_call.1} parent=43 // pred_region
          _
        $region52: #{tpu_custom_call.1} parent=43 // pred_fallthru
          _
      $region44: #{tpu_custom_call.1} parent=5 // pred_fallthru
        _
      %p1099 = scmp.le.s32.totalorder 2, %s17
      // Predicated region
      $region53: #{tpu_custom_call.1} parent=5 // pred_check
        %p1100 = pneg %p1099
      $region54: #{tpu_custom_call.1} parent=5 // pred_check_branch
        %1102 = sbr.rel (%p1100) target = $region56
      $region55: #{tpu_custom_call.1} parent=5 // pred_region
        %s1103 = ssub.s32 %s17, 2
        // Predicated region
        $region57: #{tpu_custom_call.1} parent=55 // pred_check
          %p1104 = pneg %p177
        $region58: #{tpu_custom_call.1} parent=55 // pred_check_branch
          %1106 = sbr.rel (%p1104) target = $region60
        $region59: #{tpu_custom_call.1} parent=55 // pred_region
          %s1107 = sand.u32 %s162, 1
          %s1108 = scalar_lea.sflag [#allocation3], %s1107
          %s1109 = sand.u32 %s162, 1
          %s1110 = smul.addr %s1109, 16
          %s1111 = scalar_lea.vmem [#allocation2], %s1110
          %1112 = dma.done %s1108, 256
        $region60: #{tpu_custom_call.1} parent=55 // pred_fallthru
          _
        // Predicated region
        $region61: #{tpu_custom_call.1} parent=55 // pred_check
          %p1113 = pneg %p203
        $region62: #{tpu_custom_call.1} parent=55 // pred_check_branch
          %1115 = sbr.rel (%p1113) target = $region64
        $region63: #{tpu_custom_call.1} parent=55 // pred_region
          %p1116 = scmp.lt.s32.totalorder %s23, 1
          %s1117 = scalar_select %p1116, %s23, 1
          %s1118 = smul.addr %s1117, 2
          %s1119 = smul.addr %s1118, 8
          %s1120 = scalar_lea.vmem %s7, %s1119
        $region64: #{tpu_custom_call.1} parent=55 // pred_fallthru
          _
      $region56: #{tpu_custom_call.1} parent=5 // pred_fallthru
        _
    $region6: #{tpu_custom_call.1} parent=1 // loop_footer
      %s21 = sadd.s32 1, %s17
    $region7: #{tpu_custom_call.1} parent=1 // loop_footer_branch
      %16 = sbr.rel target = $region3
    $region8: #{tpu_custom_call.1} parent=1 // loop_exit
      _
    %1121 = vsyncpa [#allocation3], 1
    %s1122 = scalar_lea.sflag [#allocation3], 1
    %1123 = vsyncpa %s1122, 1

</llo_original>
